<compile_context>
chip_gen: v7x
topology: tpu7x:2x2x1
jax: 0.10.0
libtpu: 0.0.40
codegen_flags: <defaults>
</compile_context>

<pallas_src>
import functools

import jax
import jax.numpy as jnp
from jax.experimental import pallas as pl
from jax.experimental.pallas import tpu as pltpu

INPUT_SIZE = 3            # len(params['ates'])
LAYER_SIZE = 32           # params['layer_size']
HIDDEN_LAYERS = 2         # params['hidden_layer_number']
DROPOUT_RATE = 0.3        # params['dropout_rate']
KEEP_SCALE = 1.0 / (1.0 - DROPOUT_RATE)
BN_EPS = 1e-5
ATES = (0.0, 0.47, 0.16)  # params['ates']

# Drop an element iff its uniform uint32 draw is < round(p * 2^32).
DROP_THRESHOLD_U32 = int(round(DROPOUT_RATE * (2 ** 32)))

# Operand dtype for the 32x32 hidden matmuls. Set to jnp.bfloat16 on v6e/v7x to
# cut MXU passes (accumulation stays f32); keep f32 for exact parity / v5e.
MXU_DTYPE = jnp.float32

# Packed-parameter column layout, shape (LAYER_SIZE, N_COLS):
COL_W1 = 0                 # cols 0..2 : first-layer weight W1 (32,3)
COL_B1 = 3                 # first-layer bias
COL_G1 = 4                 # BN1 gamma
COL_BETA1 = 5              # BN1 beta
COL_BH = 6                 # cols 6..7 : hidden-layer biases
COL_GH = 8                 # cols 8..9 : hidden BN gammas
COL_BETAH = 10             # cols 10..11: hidden BN betas
COL_WF = 12                # final-layer weight (32,), pre-scaled by 1/(1-p)
COL_BF = 13                # final-layer bias (broadcast down column)
N_COLS = 16

# Use the TPU hardware PRNG only when actually lowering for TPU; otherwise use
# a portable jnp-only hash so the kernel also runs under CPU interpretation.
USE_HW_PRNG = jax.default_backend() == "tpu"


def _vmem_limit_bytes():
    try:
        cap = pltpu.get_tpu_info().vmem_capacity_bytes
    except Exception:  # non-TPU backend / old runtime: conservative default
        cap = 64 * 1024 * 1024
    # Leave ~20 MiB headroom for compiler temporaries; cap at 100 MiB
    # (v5e/v6e -> 100 MiB, v7x (64 MiB physical) -> 44 MiB).
    return int(max(32 * 1024 * 1024,
                   min(cap - 20 * 1024 * 1024, 100 * 1024 * 1024)))


VMEM_LIMIT_BYTES = _vmem_limit_bytes()


def mlp_kernel(seed_ref, xt_ref, wh_ref, pk_ref, out_ref, *, use_hw_prng):
    if use_hw_prng:
        pltpu.prng_seed(seed_ref[0])
        seed_u32 = None
    else:
        seed_u32 = seed_ref[0].astype(jnp.uint32)

    def col(c):
        return pk_ref[:, c:c + 1]                         # (32, 1)

    def keep_mask(shape, layer_idx):
        if use_hw_prng:
            bits = pltpu.prng_random_bits(shape)
            if bits.dtype != jnp.uint32:
                bits = pltpu.bitcast(bits, jnp.uint32)
        else:
            # Portable counter-based hash (murmur3 fmix32 finalizer).
            r = jax.lax.broadcasted_iota(jnp.uint32, shape, 0)
            c = jax.lax.broadcasted_iota(jnp.uint32, shape, 1)
            x = (r * jnp.uint32(shape[1]) + c) * jnp.uint32(0x9E3779B9)
            x = x + seed_u32 * jnp.uint32(0x85EBCA6B)
            x = x + jnp.uint32(((layer_idx + 1) * 0xC2B2AE35) & 0xFFFFFFFF)
            x = x ^ (x >> 16)
            x = x * jnp.uint32(0x7FEB352D)
            x = x ^ (x >> 15)
            x = x * jnp.uint32(0x846CA68B)
            x = x ^ (x >> 16)
            bits = x
        return bits >= jnp.uint32(DROP_THRESHOLD_U32)     # keep with prob 1-p

    def bn_tanh_drop(h, c_gamma, c_beta, layer_idx):
        # One-pass BN stats (biased variance, matching BatchNorm1d training),
        # affine folded into per-feature scale/shift -> normalize is one FMA.
        inv_n = jnp.float32(1.0 / h.shape[1])
        s1 = jnp.sum(h, axis=1, keepdims=True)            # (32, 1)
        s2 = jnp.sum(h * h, axis=1, keepdims=True)        # (32, 1)
        mu = s1 * inv_n
        var = jnp.maximum(s2 * inv_n - mu * mu, 0.0)      # guard f32 rounding
        scale = col(c_gamma) * jax.lax.rsqrt(var + BN_EPS)
        shift = col(c_beta) - mu * scale
        ha = jnp.tanh(h * scale + shift)                  # act_func = Tanh (EUP)
        # Dropout: 1/(1-p) already folded into the next layer's weights,
        # so only a single select remains here.
        return jnp.where(keep_mask(h.shape, layer_idx), ha, jnp.float32(0.0))

    xt = xt_ref[...]                                      # (3, B), lane-dense

    # first_layer: (32,3) @ (3,B) on the (otherwise idle) MXU; Mosaic pads K=3.
    w1 = pk_ref[:, COL_W1:COL_W1 + INPUT_SIZE]            # (32, 3)
    h = jnp.dot(w1, xt, preferred_element_type=jnp.float32) + col(COL_B1)
    h = bn_tanh_drop(h, COL_G1, COL_BETA1, 0)

    # hidden layers: (32,32) @ (32,B) on the MXU with f32 accumulation.
    # Weights carry the folded dropout scale from the preceding dropout.
    for i in range(HIDDEN_LAYERS):
        w = wh_ref[i].astype(MXU_DTYPE)                   # (32, 32), (out, in)
        h = jnp.dot(w, h.astype(MXU_DTYPE),
                    preferred_element_type=jnp.float32) + col(COL_BH + i)
        h = bn_tanh_drop(h, COL_GH + i, COL_BETAH + i, 1 + i)

    # final_layer (32 -> 1): multiply + sublane reduce (VPU/XLU, no MXU).
    out_ref[...] = (jnp.sum(h * col(COL_WF), axis=0, keepdims=True)
                    + pk_ref[0:1, COL_BF:COL_BF + 1])


@jax.jit
def mlp_forward(xt, wh, packed, seed):
    """Training-mode MLP forward.

    xt: (INPUT_SIZE, B) f32, feature-major (== PyTorch input transposed).
        Store/produce inputs feature-major upstream to avoid an HBM transpose
        round trip before the kernel.
    Returns (B, 1) f32.
    """
    b = xt.shape[1]
    kernel = functools.partial(mlp_kernel, use_hw_prng=USE_HW_PRNG)
    out_t = pl.pallas_call(
        kernel,
        out_shape=jax.ShapeDtypeStruct((1, b), jnp.float32),
        in_specs=[
            pl.BlockSpec(memory_space=pltpu.MemorySpace.SMEM),   # dropout seed
            pl.BlockSpec(memory_space=pltpu.MemorySpace.VMEM),   # x^T (3, B)
            pl.BlockSpec(memory_space=pltpu.MemorySpace.VMEM),   # hidden weights
            pl.BlockSpec(memory_space=pltpu.MemorySpace.VMEM),   # packed params
        ],
        out_specs=pl.BlockSpec(memory_space=pltpu.MemorySpace.VMEM),
        compiler_params=pltpu.CompilerParams(
            vmem_limit_bytes=VMEM_LIMIT_BYTES),
    )(seed, xt, wh, packed)
    # (1,B) and (B,1) share the same linear layout -> reshape is free.
    return jnp.reshape(out_t, (b, 1))


def init_params(key):
    """Returns kernel-ready params: dropout 1/(1-p) is pre-folded into wh and
    the final-weight column (the weights consuming post-dropout activations)."""
    ks = jax.random.split(key, 5)
    bound = 1.0 / float(LAYER_SIZE) ** 0.5

    packed = jnp.zeros((LAYER_SIZE, N_COLS), jnp.float32)
    # first_layer: weight_dist_gen -> W1[:, i] ~ Normal(ates[i], 0.1); bias = 0.
    ates = jnp.array(ATES, jnp.float32)[None, :]                        # (1, 3)
    w1 = ates + 0.1 * jax.random.normal(ks[0], (LAYER_SIZE, INPUT_SIZE),
                                        jnp.float32)
    packed = packed.at[:, COL_W1:COL_W1 + INPUT_SIZE].set(w1)
    # BatchNorm1d affine defaults: gamma = 1, beta = 0 (betas already zero).
    packed = packed.at[:, COL_G1].set(1.0)
    packed = packed.at[:, COL_GH:COL_GH + HIDDEN_LAYERS].set(1.0)
    # hidden Linear biases: PyTorch default U(-1/sqrt(fan_in), 1/sqrt(fan_in)).
    bh = jax.random.uniform(ks[1], (LAYER_SIZE, HIDDEN_LAYERS), jnp.float32,
                            -bound, bound)
    packed = packed.at[:, COL_BH:COL_BH + HIDDEN_LAYERS].set(bh)
    # final layer (weight column carries the last dropout's 1/(1-p) fold).
    wf = jax.random.uniform(ks[2], (LAYER_SIZE,), jnp.float32, -bound, bound)
    bf = jax.random.uniform(ks[3], (), jnp.float32, -bound, bound)
    packed = packed.at[:, COL_WF].set(wf * KEEP_SCALE)
    packed = packed.at[:, COL_BF].set(bf)
    # hidden Linear weights, PyTorch-native (out, in) layout, dropout fold.
    wh = jax.random.uniform(ks[4], (HIDDEN_LAYERS, LAYER_SIZE, LAYER_SIZE),
                            jnp.float32, -bound, bound) * KEEP_SCALE
    return wh, packed


if __name__ == "__main__":
    key = jax.random.PRNGKey(0)
    k_x, k_p = jax.random.split(key)
    BATCH = 16
    # Feature-major input (INPUT_SIZE, BATCH) == PyTorch (BATCH, INPUT_SIZE).T
    xt = jax.random.normal(k_x, (INPUT_SIZE, BATCH), jnp.float32)
    wh, packed = init_params(k_p)
    seed = jnp.array([42], dtype=jnp.int32)
    out = mlp_forward(xt, wh, packed, seed)
    jax.block_until_ready(out)
    assert out.shape == (BATCH, 1) and out.dtype == jnp.float32
    assert bool(jnp.all(jnp.isfinite(out)))
    print("KERNEL_OK")
</pallas_src>

<mosaic_0001>
module attributes {stable_mosaic.version = 11 : i64} {
  func.func @mlp_kernel(%arg0: memref<1xi32, #tpu.memory_space<smem>>, %arg1: memref<3x16xf32, #tpu.memory_space<vmem>>, %arg2: memref<2x32x32xf32, #tpu.memory_space<vmem>>, %arg3: memref<32x16xf32, #tpu.memory_space<vmem>>, %arg4: memref<1x16xf32, #tpu.memory_space<vmem>>) attributes {dimension_semantics = [], scalar_prefetch = 0 : i64, scratch_operands = 0 : i64, tpu.core_type = #tpu.core_type<tc>} {
    %c0 = arith.constant 0 : index
    %0 = memref.load %arg0[%c0] : memref<1xi32, #tpu.memory_space<smem>>
    %c0_0 = arith.constant 0 : index
    %c0_1 = arith.constant 0 : index
    %1 = vector.load %arg1[%c0_0, %c0_1] : memref<3x16xf32, #tpu.memory_space<vmem>>, vector<3x16xf32>
    %c0_2 = arith.constant 0 : index
    %c0_3 = arith.constant 0 : index
    %2 = vector.load %arg3[%c0_2, %c0_3] : memref<32x16xf32, #tpu.memory_space<vmem>>, vector<32x3xf32>
    %cst = arith.constant dense<0.000000e+00> : vector<32x16xf32>
    %3 = tpu.matmul %2, %1, %cst {dimension_numbers = #tpu.dot_dimension_numbers<[1], [0], [0], [1], [0, 0, 1, 1], [], []>} : vector<32x3xf32>, vector<3x16xf32>, vector<32x16xf32> -> vector<32x16xf32>
    %c0_4 = arith.constant 0 : index
    %c3 = arith.constant 3 : index
    %4 = vector.load %arg3[%c0_4, %c3] : memref<32x16xf32, #tpu.memory_space<vmem>>, vector<32x1xf32>
    %5 = vector.broadcast %4 : vector<32x1xf32> to vector<32x16xf32>
    %6 = arith.addf %3, %5 : vector<32x16xf32>
    %cst_5 = arith.constant dense<0.000000e+00> : vector<32xf32>
    %7 = vector.multi_reduction <add>, %6, %cst_5 [1] : vector<32x16xf32> to vector<32xf32>
    %8 = vector.shape_cast %7 : vector<32xf32> to vector<32x1xf32>
    %9 = arith.mulf %6, %6 : vector<32x16xf32>
    %cst_6 = arith.constant dense<0.000000e+00> : vector<32xf32>
    %10 = vector.multi_reduction <add>, %9, %cst_6 [1] : vector<32x16xf32> to vector<32xf32>
    %11 = vector.shape_cast %10 : vector<32xf32> to vector<32x1xf32>
    %cst_7 = arith.constant 6.250000e-02 : f32
    %12 = vector.broadcast %cst_7 : f32 to vector<32x1xf32>
    %13 = arith.mulf %8, %12 : vector<32x1xf32>
    %cst_8 = arith.constant 6.250000e-02 : f32
    %14 = vector.broadcast %cst_8 : f32 to vector<32x1xf32>
    %15 = arith.mulf %11, %14 : vector<32x1xf32>
    %16 = arith.mulf %13, %13 : vector<32x1xf32>
    %17 = arith.subf %15, %16 : vector<32x1xf32>
    %cst_9 = arith.constant 0.000000e+00 : f32
    %18 = vector.broadcast %cst_9 : f32 to vector<32x1xf32>
    %19 = arith.maximumf %17, %18 : vector<32x1xf32>
    %c0_10 = arith.constant 0 : index
    %c4 = arith.constant 4 : index
    %20 = vector.load %arg3[%c0_10, %c4] : memref<32x16xf32, #tpu.memory_space<vmem>>, vector<32x1xf32>
    %cst_11 = arith.constant 9.99999974E-6 : f32
    %21 = vector.broadcast %cst_11 : f32 to vector<32x1xf32>
    %22 = arith.addf %19, %21 : vector<32x1xf32>
    %23 = math.rsqrt %22 : vector<32x1xf32>
    %24 = arith.mulf %20, %23 : vector<32x1xf32>
    %c0_12 = arith.constant 0 : index
    %c5 = arith.constant 5 : index
    %25 = vector.load %arg3[%c0_12, %c5] : memref<32x16xf32, #tpu.memory_space<vmem>>, vector<32x1xf32>
    %26 = arith.mulf %13, %24 : vector<32x1xf32>
    %27 = arith.subf %25, %26 : vector<32x1xf32>
    %28 = vector.broadcast %24 : vector<32x1xf32> to vector<32x16xf32>
    %29 = arith.mulf %6, %28 : vector<32x16xf32>
    %30 = vector.broadcast %27 : vector<32x1xf32> to vector<32x16xf32>
    %31 = arith.addf %29, %30 : vector<32x16xf32>
    %32 = math.tanh %31 : vector<32x16xf32>
    %33 = tpu.iota {dimensions = array<i32: 0>} : vector<32x16xi32>
    %34 = tpu.iota {dimensions = array<i32: 1>} : vector<32x16xi32>
    %c16_i32 = arith.constant 16 : i32
    %35 = vector.broadcast %c16_i32 : i32 to vector<32x16xi32>
    %36 = arith.muli %33, %35 : vector<32x16xi32>
    %37 = arith.addi %36, %34 : vector<32x16xi32>
    %c-1640531527_i32 = arith.constant -1640531527 : i32
    %38 = vector.broadcast %c-1640531527_i32 : i32 to vector<32x16xi32>
    %39 = arith.muli %37, %38 : vector<32x16xi32>
    %c-2048144789_i32 = arith.constant -2048144789 : i32
    %40 = arith.muli %0, %c-2048144789_i32 : i32
    %41 = vector.broadcast %40 : i32 to vector<32x16xi32>
    %42 = arith.addi %39, %41 : vector<32x16xi32>
    %c-1028477387_i32 = arith.constant -1028477387 : i32
    %43 = vector.broadcast %c-1028477387_i32 : i32 to vector<32x16xi32>
    %44 = arith.addi %42, %43 : vector<32x16xi32>
    %c16_i32_13 = arith.constant 16 : i32
    %45 = vector.broadcast %c16_i32_13 : i32 to vector<32x16xi32>
    %46 = arith.shrui %44, %45 : vector<32x16xi32>
    %47 = arith.xori %44, %46 : vector<32x16xi32>
    %c2146121005_i32 = arith.constant 2146121005 : i32
    %48 = vector.broadcast %c2146121005_i32 : i32 to vector<32x16xi32>
    %49 = arith.muli %47, %48 : vector<32x16xi32>
    %c15_i32 = arith.constant 15 : i32
    %50 = vector.broadcast %c15_i32 : i32 to vector<32x16xi32>
    %51 = arith.shrui %49, %50 : vector<32x16xi32>
    %52 = arith.xori %49, %51 : vector<32x16xi32>
    %c-2073254261_i32 = arith.constant -2073254261 : i32
    %53 = vector.broadcast %c-2073254261_i32 : i32 to vector<32x16xi32>
    %54 = arith.muli %52, %53 : vector<32x16xi32>
    %c16_i32_14 = arith.constant 16 : i32
    %55 = vector.broadcast %c16_i32_14 : i32 to vector<32x16xi32>
    %56 = arith.shrui %54, %55 : vector<32x16xi32>
    %57 = arith.xori %54, %56 : vector<32x16xi32>
    %c1288490189_i32 = arith.constant 1288490189 : i32
    %58 = vector.broadcast %c1288490189_i32 : i32 to vector<32x16xi32>
    %59 = arith.cmpi uge, %57, %58 : vector<32x16xi32>
    %cst_15 = arith.constant 0.000000e+00 : f32
    %60 = vector.broadcast %cst_15 : f32 to vector<32x16xf32>
    %61 = arith.select %59, %32, %60 : vector<32x16xi1>, vector<32x16xf32>
    %c0_16 = arith.constant 0 : index
    %c0_17 = arith.constant 0 : index
    %c0_18 = arith.constant 0 : index
    %62 = vector.load %arg2[%c0_16, %c0_17, %c0_18] : memref<2x32x32xf32, #tpu.memory_space<vmem>>, vector<1x32x32xf32>
    %63 = vector.shape_cast %62 : vector<1x32x32xf32> to vector<32x32xf32>
    %cst_19 = arith.constant dense<0.000000e+00> : vector<32x16xf32>
    %64 = tpu.matmul %63, %61, %cst_19 {dimension_numbers = #tpu.dot_dimension_numbers<[1], [0], [0], [1], [0, 0, 1, 1], [], []>} : vector<32x32xf32>, vector<32x16xf32>, vector<32x16xf32> -> vector<32x16xf32>
    %c0_20 = arith.constant 0 : index
    %c6 = arith.constant 6 : index
    %65 = vector.load %arg3[%c0_20, %c6] : memref<32x16xf32, #tpu.memory_space<vmem>>, vector<32x1xf32>
    %66 = vector.broadcast %65 : vector<32x1xf32> to vector<32x16xf32>
    %67 = arith.addf %64, %66 : vector<32x16xf32>
    %cst_21 = arith.constant dense<0.000000e+00> : vector<32xf32>
    %68 = vector.multi_reduction <add>, %67, %cst_21 [1] : vector<32x16xf32> to vector<32xf32>
    %69 = vector.shape_cast %68 : vector<32xf32> to vector<32x1xf32>
    %70 = arith.mulf %67, %67 : vector<32x16xf32>
    %cst_22 = arith.constant dense<0.000000e+00> : vector<32xf32>
    %71 = vector.multi_reduction <add>, %70, %cst_22 [1] : vector<32x16xf32> to vector<32xf32>
    %72 = vector.shape_cast %71 : vector<32xf32> to vector<32x1xf32>
    %cst_23 = arith.constant 6.250000e-02 : f32
    %73 = vector.broadcast %cst_23 : f32 to vector<32x1xf32>
    %74 = arith.mulf %69, %73 : vector<32x1xf32>
    %cst_24 = arith.constant 6.250000e-02 : f32
    %75 = vector.broadcast %cst_24 : f32 to vector<32x1xf32>
    %76 = arith.mulf %72, %75 : vector<32x1xf32>
    %77 = arith.mulf %74, %74 : vector<32x1xf32>
    %78 = arith.subf %76, %77 : vector<32x1xf32>
    %cst_25 = arith.constant 0.000000e+00 : f32
    %79 = vector.broadcast %cst_25 : f32 to vector<32x1xf32>
    %80 = arith.maximumf %78, %79 : vector<32x1xf32>
    %c0_26 = arith.constant 0 : index
    %c8 = arith.constant 8 : index
    %81 = vector.load %arg3[%c0_26, %c8] : memref<32x16xf32, #tpu.memory_space<vmem>>, vector<32x1xf32>
    %cst_27 = arith.constant 9.99999974E-6 : f32
    %82 = vector.broadcast %cst_27 : f32 to vector<32x1xf32>
    %83 = arith.addf %80, %82 : vector<32x1xf32>
    %84 = math.rsqrt %83 : vector<32x1xf32>
    %85 = arith.mulf %81, %84 : vector<32x1xf32>
    %c0_28 = arith.constant 0 : index
    %c10 = arith.constant 10 : index
    %86 = vector.load %arg3[%c0_28, %c10] : memref<32x16xf32, #tpu.memory_space<vmem>>, vector<32x1xf32>
    %87 = arith.mulf %74, %85 : vector<32x1xf32>
    %88 = arith.subf %86, %87 : vector<32x1xf32>
    %89 = vector.broadcast %85 : vector<32x1xf32> to vector<32x16xf32>
    %90 = arith.mulf %67, %89 : vector<32x16xf32>
    %91 = vector.broadcast %88 : vector<32x1xf32> to vector<32x16xf32>
    %92 = arith.addf %90, %91 : vector<32x16xf32>
    %93 = math.tanh %92 : vector<32x16xf32>
    %94 = tpu.iota {dimensions = array<i32: 0>} : vector<32x16xi32>
    %95 = tpu.iota {dimensions = array<i32: 1>} : vector<32x16xi32>
    %c16_i32_29 = arith.constant 16 : i32
    %96 = vector.broadcast %c16_i32_29 : i32 to vector<32x16xi32>
    %97 = arith.muli %94, %96 : vector<32x16xi32>
    %98 = arith.addi %97, %95 : vector<32x16xi32>
    %c-1640531527_i32_30 = arith.constant -1640531527 : i32
    %99 = vector.broadcast %c-1640531527_i32_30 : i32 to vector<32x16xi32>
    %100 = arith.muli %98, %99 : vector<32x16xi32>
    %c-2048144789_i32_31 = arith.constant -2048144789 : i32
    %101 = arith.muli %0, %c-2048144789_i32_31 : i32
    %102 = vector.broadcast %101 : i32 to vector<32x16xi32>
    %103 = arith.addi %100, %102 : vector<32x16xi32>
    %c-2056954774_i32 = arith.constant -2056954774 : i32
    %104 = vector.broadcast %c-2056954774_i32 : i32 to vector<32x16xi32>
    %105 = arith.addi %103, %104 : vector<32x16xi32>
    %c16_i32_32 = arith.constant 16 : i32
    %106 = vector.broadcast %c16_i32_32 : i32 to vector<32x16xi32>
    %107 = arith.shrui %105, %106 : vector<32x16xi32>
    %108 = arith.xori %105, %107 : vector<32x16xi32>
    %c2146121005_i32_33 = arith.constant 2146121005 : i32
    %109 = vector.broadcast %c2146121005_i32_33 : i32 to vector<32x16xi32>
    %110 = arith.muli %108, %109 : vector<32x16xi32>
    %c15_i32_34 = arith.constant 15 : i32
    %111 = vector.broadcast %c15_i32_34 : i32 to vector<32x16xi32>
    %112 = arith.shrui %110, %111 : vector<32x16xi32>
    %113 = arith.xori %110, %112 : vector<32x16xi32>
    %c-2073254261_i32_35 = arith.constant -2073254261 : i32
    %114 = vector.broadcast %c-2073254261_i32_35 : i32 to vector<32x16xi32>
    %115 = arith.muli %113, %114 : vector<32x16xi32>
    %c16_i32_36 = arith.constant 16 : i32
    %116 = vector.broadcast %c16_i32_36 : i32 to vector<32x16xi32>
    %117 = arith.shrui %115, %116 : vector<32x16xi32>
    %118 = arith.xori %115, %117 : vector<32x16xi32>
    %c1288490189_i32_37 = arith.constant 1288490189 : i32
    %119 = vector.broadcast %c1288490189_i32_37 : i32 to vector<32x16xi32>
    %120 = arith.cmpi uge, %118, %119 : vector<32x16xi32>
    %cst_38 = arith.constant 0.000000e+00 : f32
    %121 = vector.broadcast %cst_38 : f32 to vector<32x16xf32>
    %122 = arith.select %120, %93, %121 : vector<32x16xi1>, vector<32x16xf32>
    %c1 = arith.constant 1 : index
    %c0_39 = arith.constant 0 : index
    %c0_40 = arith.constant 0 : index
    %123 = vector.load %arg2[%c1, %c0_39, %c0_40] : memref<2x32x32xf32, #tpu.memory_space<vmem>>, vector<1x32x32xf32>
    %124 = vector.shape_cast %123 : vector<1x32x32xf32> to vector<32x32xf32>
    %cst_41 = arith.constant dense<0.000000e+00> : vector<32x16xf32>
    %125 = tpu.matmul %124, %122, %cst_41 {dimension_numbers = #tpu.dot_dimension_numbers<[1], [0], [0], [1], [0, 0, 1, 1], [], []>} : vector<32x32xf32>, vector<32x16xf32>, vector<32x16xf32> -> vector<32x16xf32>
    %c0_42 = arith.constant 0 : index
    %c7 = arith.constant 7 : index
    %126 = vector.load %arg3[%c0_42, %c7] : memref<32x16xf32, #tpu.memory_space<vmem>>, vector<32x1xf32>
    %127 = vector.broadcast %126 : vector<32x1xf32> to vector<32x16xf32>
    %128 = arith.addf %125, %127 : vector<32x16xf32>
    %cst_43 = arith.constant dense<0.000000e+00> : vector<32xf32>
    %129 = vector.multi_reduction <add>, %128, %cst_43 [1] : vector<32x16xf32> to vector<32xf32>
    %130 = vector.shape_cast %129 : vector<32xf32> to vector<32x1xf32>
    %131 = arith.mulf %128, %128 : vector<32x16xf32>
    %cst_44 = arith.constant dense<0.000000e+00> : vector<32xf32>
    %132 = vector.multi_reduction <add>, %131, %cst_44 [1] : vector<32x16xf32> to vector<32xf32>
    %133 = vector.shape_cast %132 : vector<32xf32> to vector<32x1xf32>
    %cst_45 = arith.constant 6.250000e-02 : f32
    %134 = vector.broadcast %cst_45 : f32 to vector<32x1xf32>
    %135 = arith.mulf %130, %134 : vector<32x1xf32>
    %cst_46 = arith.constant 6.250000e-02 : f32
    %136 = vector.broadcast %cst_46 : f32 to vector<32x1xf32>
    %137 = arith.mulf %133, %136 : vector<32x1xf32>
    %138 = arith.mulf %135, %135 : vector<32x1xf32>
    %139 = arith.subf %137, %138 : vector<32x1xf32>
    %cst_47 = arith.constant 0.000000e+00 : f32
    %140 = vector.broadcast %cst_47 : f32 to vector<32x1xf32>
    %141 = arith.maximumf %139, %140 : vector<32x1xf32>
    %c0_48 = arith.constant 0 : index
    %c9 = arith.constant 9 : index
    %142 = vector.load %arg3[%c0_48, %c9] : memref<32x16xf32, #tpu.memory_space<vmem>>, vector<32x1xf32>
    %cst_49 = arith.constant 9.99999974E-6 : f32
    %143 = vector.broadcast %cst_49 : f32 to vector<32x1xf32>
    %144 = arith.addf %141, %143 : vector<32x1xf32>
    %145 = math.rsqrt %144 : vector<32x1xf32>
    %146 = arith.mulf %142, %145 : vector<32x1xf32>
    %c0_50 = arith.constant 0 : index
    %c11 = arith.constant 11 : index
    %147 = vector.load %arg3[%c0_50, %c11] : memref<32x16xf32, #tpu.memory_space<vmem>>, vector<32x1xf32>
    %148 = arith.mulf %135, %146 : vector<32x1xf32>
    %149 = arith.subf %147, %148 : vector<32x1xf32>
    %150 = vector.broadcast %146 : vector<32x1xf32> to vector<32x16xf32>
    %151 = arith.mulf %128, %150 : vector<32x16xf32>
    %152 = vector.broadcast %149 : vector<32x1xf32> to vector<32x16xf32>
    %153 = arith.addf %151, %152 : vector<32x16xf32>
    %154 = math.tanh %153 : vector<32x16xf32>
    %155 = tpu.iota {dimensions = array<i32: 0>} : vector<32x16xi32>
    %156 = tpu.iota {dimensions = array<i32: 1>} : vector<32x16xi32>
    %c16_i32_51 = arith.constant 16 : i32
    %157 = vector.broadcast %c16_i32_51 : i32 to vector<32x16xi32>
    %158 = arith.muli %155, %157 : vector<32x16xi32>
    %159 = arith.addi %158, %156 : vector<32x16xi32>
    %c-1640531527_i32_52 = arith.constant -1640531527 : i32
    %160 = vector.broadcast %c-1640531527_i32_52 : i32 to vector<32x16xi32>
    %161 = arith.muli %159, %160 : vector<32x16xi32>
    %c-2048144789_i32_53 = arith.constant -2048144789 : i32
    %162 = arith.muli %0, %c-2048144789_i32_53 : i32
    %163 = vector.broadcast %162 : i32 to vector<32x16xi32>
    %164 = arith.addi %161, %163 : vector<32x16xi32>
    %c1209535135_i32 = arith.constant 1209535135 : i32
    %165 = vector.broadcast %c1209535135_i32 : i32 to vector<32x16xi32>
    %166 = arith.addi %164, %165 : vector<32x16xi32>
    %c16_i32_54 = arith.constant 16 : i32
    %167 = vector.broadcast %c16_i32_54 : i32 to vector<32x16xi32>
    %168 = arith.shrui %166, %167 : vector<32x16xi32>
    %169 = arith.xori %166, %168 : vector<32x16xi32>
    %c2146121005_i32_55 = arith.constant 2146121005 : i32
    %170 = vector.broadcast %c2146121005_i32_55 : i32 to vector<32x16xi32>
    %171 = arith.muli %169, %170 : vector<32x16xi32>
    %c15_i32_56 = arith.constant 15 : i32
    %172 = vector.broadcast %c15_i32_56 : i32 to vector<32x16xi32>
    %173 = arith.shrui %171, %172 : vector<32x16xi32>
    %174 = arith.xori %171, %173 : vector<32x16xi32>
    %c-2073254261_i32_57 = arith.constant -2073254261 : i32
    %175 = vector.broadcast %c-2073254261_i32_57 : i32 to vector<32x16xi32>
    %176 = arith.muli %174, %175 : vector<32x16xi32>
    %c16_i32_58 = arith.constant 16 : i32
    %177 = vector.broadcast %c16_i32_58 : i32 to vector<32x16xi32>
    %178 = arith.shrui %176, %177 : vector<32x16xi32>
    %179 = arith.xori %176, %178 : vector<32x16xi32>
    %c1288490189_i32_59 = arith.constant 1288490189 : i32
    %180 = vector.broadcast %c1288490189_i32_59 : i32 to vector<32x16xi32>
    %181 = arith.cmpi uge, %179, %180 : vector<32x16xi32>
    %cst_60 = arith.constant 0.000000e+00 : f32
    %182 = vector.broadcast %cst_60 : f32 to vector<32x16xf32>
    %183 = arith.select %181, %154, %182 : vector<32x16xi1>, vector<32x16xf32>
    %c0_61 = arith.constant 0 : index
    %c12 = arith.constant 12 : index
    %184 = vector.load %arg3[%c0_61, %c12] : memref<32x16xf32, #tpu.memory_space<vmem>>, vector<32x1xf32>
    %185 = vector.broadcast %184 : vector<32x1xf32> to vector<32x16xf32>
    %186 = arith.mulf %183, %185 : vector<32x16xf32>
    %cst_62 = arith.constant dense<0.000000e+00> : vector<16xf32>
    %187 = vector.multi_reduction <add>, %186, %cst_62 [0] : vector<32x16xf32> to vector<16xf32>
    %188 = vector.shape_cast %187 : vector<16xf32> to vector<1x16xf32>
    %c0_63 = arith.constant 0 : index
    %c13 = arith.constant 13 : index
    %189 = vector.load %arg3[%c0_63, %c13] : memref<32x16xf32, #tpu.memory_space<vmem>>, vector<1x1xf32>
    %190 = vector.broadcast %189 : vector<1x1xf32> to vector<1x16xf32>
    %191 = arith.addf %188, %190 : vector<1x16xf32>
    %c0_64 = arith.constant 0 : index
    %c0_65 = arith.constant 0 : index
    %192 = vector.load %arg4[%c0_64, %c0_65] : memref<1x16xf32, #tpu.memory_space<vmem>>, vector<1x16xf32>
    tpu.vector_store %arg4[%c0_64, %c0_65], %191 {strides = array<i32>} : memref<1x16xf32, #tpu.memory_space<vmem>>, vector<1x16xf32>,
    return
  }
}

</mosaic_0001>

<llo_original>
// kernel: mlp_forward.1
$region0: #{mlp_forward.1}
  #allocation0 [shape = 'u32[]', space=smem, size = 0x4, offset = 0x4, fixed_abs, tag = 'smem constant byte address 0x4 - core index']
  #allocation1 [shape = 'u32[144,128]{1,0:T(1,128)}', space=vmem, size = 0x12000, scoped, tag = 'internal scratch']
  #allocation2 [shape = 's32[1]{0:T(128)S(6)}', space=smem, size = 0x200, scoped, tag = 'scoped memory for mlp_forward.1']
  %s0 = inlined_call_operand.<no memory space> [shape: s32[1], index: 0, kind: input, shape index: {}]
  %s1 = inlined_call_operand.vmem [shape: f32[3,16], index: 1, kind: input, shape index: {}]
  %s2 = inlined_call_operand.hbm [shape: f32[2,32,32], index: 2, kind: input, shape index: {}]
  %s3 = inlined_call_operand.vmem [shape: f32[32,16], index: 3, kind: input, shape index: {}]
  %s4 = inlined_call_operand.hbm [shape: f32[1,16], index: 4, kind: output, shape index: {}]
  %s5 = sld [smem:[#allocation0]]
  $region30: #{mlp_forward.1} parent=0
    _
  %s7 = ssub.s32 1, %s5
  %s8 = scalar_select 0, %s7, %s5
  %9 = sst [smem:[#allocation2]] %s0
  $region1: #{mlp_forward.1} parent=0
    #allocation3 [shape = 'u8[32768]{0}', space=vmem, size = 0x8000, scoped, tag = 'input window, operand 2, single buffered']
    #allocation4 [shape = 's32[1]{0}', space=sflag, size = 0x4, scoped, tag = 'scoped memory for mlp_forward.1']
    #allocation5 [shape = 's32[1]{0}', space=sflag, size = 0x4, scoped, tag = 'scoped memory for mlp_forward.1']
    #allocation6 [shape = 'u8[512]{0}', space=vmem, size = 0x400, scoped, tag = 'output window, operand 0, single buffered']
    %10 = vsyncpa [#allocation4], 0
    %11 = vsyncpa [#allocation5], 0
    // Predicated region
    $region2: #{mlp_forward.1} parent=1 // pred_check
      _
    $region3: #{mlp_forward.1} parent=1 // pred_check_branch
      %13 = sbr.rel (0) target = $region5
    $region4: #{mlp_forward.1} parent=1 // pred_region
      _
    $region5: #{mlp_forward.1} parent=1 // pred_fallthru
      _
    // Predicated region
    $region6: #{mlp_forward.1} parent=1 // pred_check
      _
    $region7: #{mlp_forward.1} parent=1 // pred_check_branch
      %15 = sbr.rel (0) target = $region9
    $region8: #{mlp_forward.1} parent=1 // pred_region
      _
    $region9: #{mlp_forward.1} parent=1 // pred_fallthru
      _
    // Predicated region
    $region10: #{mlp_forward.1} parent=1 // pred_check
      _
    $region11: #{mlp_forward.1} parent=1 // pred_check_branch
      %17 = sbr.rel (0) target = $region13
    $region12: #{mlp_forward.1} parent=1 // pred_region
      %s19 = ssub.s32 1024, 1024
      %20 = vsyncadd [#allocation4], %s19
      %s21 = sshll.u32 [#allocation3], 4
      %s22 = int_to_ptr.vmem [resolvable:$true] %s21
      %27 = dma.hbm_to_vmem [thread:$0]  %s2, 1024, %s22, [#allocation4], 128, 128, 8
    $region13: #{mlp_forward.1} parent=1 // pred_fallthru
      _
    // Predicated region
    $region14: #{mlp_forward.1} parent=1 // pred_check
      _
    $region15: #{mlp_forward.1} parent=1 // pred_check_branch
      %29 = sbr.rel (0) target = $region17
    $region16: #{mlp_forward.1} parent=1 // pred_region
      _
    $region17: #{mlp_forward.1} parent=1 // pred_fallthru
      _
    // Predicated region
    $region18: #{mlp_forward.1} parent=1 // pred_check
      _
    $region19: #{mlp_forward.1} parent=1 // pred_check_branch
      %31 = sbr.rel (0) target = $region21
    $region20: #{mlp_forward.1} parent=1 // pred_region
      %32 = dma.done [#allocation4], 1024
    $region21: #{mlp_forward.1} parent=1 // pred_fallthru
      _
    %s33 = sld [smem:[#allocation2]]
    %v34 = vld [vmem:[%s1] sm:$0x7]
    %v35 = vld [vmem:[%s3] sm:$0xff]
    %v36 = vld [vmem:[%s3 + $0x8] sm:$0xff]
    %v37 = vld [vmem:[%s3 + $0x10] sm:$0xff]
    %v38 = vld [vmem:[%s3 + $0x18] sm:$0xff]
    %40 = vset.pattern.permute.xlu0 3
    %41 = vperm.xlu0 %40, %v35
    %v42 = vpop.permute.xlu0 %41
    %45 = vset.pattern.permute.xlu0 3
    %46 = vperm.xlu0 %45, %v36
    %v47 = vpop.permute.xlu0 %46
    %50 = vset.pattern.permute.xlu0 3
    %51 = vperm.xlu0 %50, %v37
    %v52 = vpop.permute.xlu0 %51
    %55 = vset.pattern.permute.xlu0 3
    %56 = vperm.xlu0 %55, %v38
    %v57 = vpop.permute.xlu0 %56
    %vm59 = vcmask 23552
    %v60 = vsel %vm59, %v35, 0
    %v62 = vsel %vm59, %v36, 0
    %v64 = vsel %vm59, %v37, 0
    %v66 = vsel %vm59, %v38, 0
    %vm68 = vcmask 1042432
    %v70 = vsel %vm68, %v34, 0
    %72 = vmatprep.subr.mxu0 0.0
    %73 = vmatpush1.msra.mxu0 %v70
    %74 = vmatprep.subr.mxu0 0.0
    %75 = vmatpush1.msra.mxu0 0.0
    %76 = vmatprep.subr.mxu0 0.0
    %77 = vmatpush1.msra.mxu0 0.0
    %78 = vmatprep.subr.mxu0 0.0
    %79 = vmatpush1.msra.mxu0 0.0
    %80 = vmatprep.subr.mxu0 0.0
    %81 = vmatpush1.msra.mxu0 0.0
    %82 = vmatprep.subr.mxu0 0.0
    %83 = vmatpush1.msra.mxu0 0.0
    %84 = vmatprep.subr.mxu0 0.0
    %85 = vmatpush1.msra.mxu0 0.0
    %86 = vmatprep.subr.mxu0 0.0
    %87 = vmatpush1.msra.mxu0 0.0
    %88 = vmatprep.subr.mxu0 0.0
    %89 = vmatpush1.msra.mxu0 0.0
    %90 = vmatprep.subr.mxu0 0.0
    %91 = vmatpush1.msra.mxu0 0.0
    %92 = vmatprep.subr.mxu0 0.0
    %93 = vmatpush1.msra.mxu0 0.0
    %94 = vmatprep.subr.mxu0 0.0
    %95 = vmatpush1.msra.mxu0 0.0
    %96 = vmatprep.subr.mxu0 0.0
    %97 = vmatpush1.msra.mxu0 0.0
    %98 = vmatprep.subr.mxu0 0.0
    %99 = vmatpush1.msra.mxu0 0.0
    %100 = vmatprep.subr.mxu0 0.0
    %101 = vmatpush1.msra.mxu0 0.0
    %102 = vmatprep.subr.mxu0 0.0
    %103 = vmatpush1.msra.mxu0 0.0
    %104 = vmatprep.subr.mxu0 0.0
    %105 = vmatpush1.msra.mxu0 0.0
    %106 = vmatprep.subr.mxu0 0.0
    %107 = vmatpush1.msra.mxu0 0.0
    %108 = vmatprep.subr.mxu0 0.0
    %109 = vmatpush1.msra.mxu0 0.0
    %110 = vmatprep.subr.mxu0 0.0
    %111 = vmatpush1.msra.mxu0 0.0
    %112 = vmatprep.subr.mxu0 0.0
    %113 = vmatpush1.msra.mxu0 0.0
    %114 = vmatprep.subr.mxu0 0.0
    %115 = vmatpush1.msra.mxu0 0.0
    %116 = vmatprep.subr.mxu0 0.0
    %117 = vmatpush1.msra.mxu0 0.0
    %118 = vmatprep.subr.mxu0 0.0
    %119 = vmatpush1.msra.mxu0 0.0
    %120 = vmatprep.subr.mxu0 0.0
    %121 = vmatpush1.msra.mxu0 0.0
    %122 = vmatprep.subr.mxu0 0.0
    %123 = vmatpush1.msra.mxu0 0.0
    %124 = vmatprep.subr.mxu0 0.0
    %125 = vmatpush1.msra.mxu0 0.0
    %126 = vmatprep.subr.mxu0 0.0
    %127 = vmatpush1.msra.mxu0 0.0
    %128 = vmatprep.subr.mxu0 0.0
    %129 = vmatpush1.msra.mxu0 0.0
    %130 = vmatprep.subr.mxu0 0.0
    %131 = vmatpush1.msra.mxu0 0.0
    %132 = vmatprep.subr.mxu0 0.0
    %133 = vmatpush1.msra.mxu0 0.0
    %134 = vmatprep.subr.mxu0 0.0
    %135 = vmatpush1.msra.mxu0 0.0
    %136 = vmatprep.mubr.f32.mxu0 0.0
    %137 = vmatmul.mubr.f32.gmra.mrb[0].mxu0 %v60
    %v138 = vpop.f32.mrb[0].mxu0
    %v139 = vadd.f32 %v42, %v138
    %v140 = vpop.f32.mrb[0].mxu0
    %141 = vmatprep.mubr.f32.mxu0 0.0
    %142 = vmatmul.mubr.f32.gmra.mrb[0].mxu0 %v62
    %v143 = vpop.f32.mrb[0].mxu0
    %v144 = vadd.f32 %v47, %v143
    %v145 = vpop.f32.mrb[0].mxu0
    %146 = vmatprep.mubr.f32.mxu0 0.0
    %147 = vmatmul.mubr.f32.gmra.mrb[0].mxu0 %v64
    %v148 = vpop.f32.mrb[0].mxu0
    %v149 = vadd.f32 %v52, %v148
    %v150 = vpop.f32.mrb[0].mxu0
    %151 = vmatprep.mubr.f32.mxu0 0.0
    %152 = vmatmul.mubr.f32.gmra.mrb[0].mxu0 %v66
    %v153 = vpop.f32.mrb[0].mxu0
    %v154 = vadd.f32 %v57, %v153
    %v155 = vpop.f32.mrb[0].mxu0
    %156 = vdwg.mxu0
    %vm157 = vcmask 130048
    %v158 = vsel %vm157, %v139, 0.0
    %159 = vadd.xlane.f32.xlu0 %v158
    %v160 = vpop.xlane.xlu0 %159
    %v161 = vsel %vm157, %v144, 0.0
    %162 = vadd.xlane.f32.xlu0 %v161
    %v163 = vpop.xlane.xlu0 %162
    %v164 = vsel %vm157, %v149, 0.0
    %165 = vadd.xlane.f32.xlu0 %v164
    %v166 = vpop.xlane.xlu0 %165
    %v167 = vsel %vm157, %v154, 0.0
    %168 = vadd.xlane.f32.xlu0 %v167
    %v169 = vpop.xlane.xlu0 %168
    %v170 = vmul.f32 %v139, %v139
    %v171 = vmul.f32 %v144, %v144
    %v172 = vmul.f32 %v149, %v149
    %v173 = vmul.f32 %v154, %v154
    %v174 = vsel %vm157, %v170, 0.0
    %175 = vadd.xlane.f32.xlu0 %v174
    %v176 = vpop.xlane.xlu0 %175
    %v177 = vsel %vm157, %v171, 0.0
    %178 = vadd.xlane.f32.xlu0 %v177
    %v179 = vpop.xlane.xlu0 %178
    %v180 = vsel %vm157, %v172, 0.0
    %181 = vadd.xlane.f32.xlu0 %v180
    %v182 = vpop.xlane.xlu0 %181
    %v183 = vsel %vm157, %v173, 0.0
    %184 = vadd.xlane.f32.xlu0 %v183
    %v185 = vpop.xlane.xlu0 %184
    %v186 = vmul.f32 %v160, 0.0625
    %v187 = vmul.f32 %v163, 0.0625
    %v188 = vmul.f32 %v166, 0.0625
    %v189 = vmul.f32 %v169, 0.0625
    %v190 = vmul.f32 %v176, 0.0625
    %v191 = vmul.f32 %v179, 0.0625
    %v192 = vmul.f32 %v182, 0.0625
    %v193 = vmul.f32 %v185, 0.0625
    %v194 = vmul.f32 %v186, %v186
    %v195 = vmul.f32 %v187, %v187
    %v196 = vmul.f32 %v188, %v188
    %v197 = vmul.f32 %v189, %v189
    %v198 = vsub.f32 %v190, %v194
    %v199 = vsub.f32 %v191, %v195
    %v200 = vsub.f32 %v192, %v196
    %v201 = vsub.f32 %v193, %v197
    %v202 = vmax.f32 %v198, 0.0
    %v203 = vmax.f32 %v199, 0.0
    %v204 = vmax.f32 %v200, 0.0
    %v205 = vmax.f32 %v201, 0.0
    %v206 = vadd.f32 %v202, 1e-05
    %v207 = vadd.f32 %v203, 1e-05
    %v208 = vadd.f32 %v204, 1e-05
    %v209 = vadd.f32 %v205, 1e-05
    %v210 = vrsqrt.pop %v206
    %v211 = vrsqrt.pop %v207
    %v212 = vrsqrt.pop %v208
    %v213 = vrsqrt.pop %v209
    %v214 = vmul.f32 %v35, %v210
    %v215 = vmul.f32 %v36, %v211
    %v216 = vmul.f32 %v37, %v212
    %v217 = vmul.f32 %v38, %v213
    %v218 = vmul.f32 %v186, %v214
    %v219 = vmul.f32 %v187, %v215
    %v220 = vmul.f32 %v188, %v216
    %v221 = vmul.f32 %v189, %v217
    %226 = vrot.lane.b32.xlu0 %v218, 1
    %v227 = vpop.permute.xlu0 %226
    %228 = vrot.lane.b32.xlu0 %v219, 1
    %v229 = vpop.permute.xlu0 %228
    %230 = vrot.lane.b32.xlu0 %v220, 1
    %v231 = vpop.permute.xlu0 %230
    %232 = vrot.lane.b32.xlu0 %v221, 1
    %v233 = vpop.permute.xlu0 %232
    %v238 = vsub.f32 %v35, %v227
    %v239 = vsub.f32 %v36, %v229
    %v240 = vsub.f32 %v37, %v231
    %v241 = vsub.f32 %v38, %v233
    %243 = vset.pattern.permute.xlu0 4
    %244 = vperm.xlu0 %243, %v214
    %v245 = vpop.permute.xlu0 %244
    %248 = vset.pattern.permute.xlu0 4
    %249 = vperm.xlu0 %248, %v215
    %v250 = vpop.permute.xlu0 %249
    %253 = vset.pattern.permute.xlu0 4
    %254 = vperm.xlu0 %253, %v216
    %v255 = vpop.permute.xlu0 %254
    %258 = vset.pattern.permute.xlu0 4
    %259 = vperm.xlu0 %258, %v217
    %v260 = vpop.permute.xlu0 %259
    %v262 = vmul.f32 %v139, %v245
    %v263 = vmul.f32 %v144, %v250
    %v264 = vmul.f32 %v149, %v255
    %v265 = vmul.f32 %v154, %v260
    %267 = vset.pattern.permute.xlu0 5
    %268 = vperm.xlu0 %267, %v238
    %v269 = vpop.permute.xlu0 %268
    %272 = vset.pattern.permute.xlu0 5
    %273 = vperm.xlu0 %272, %v239
    %v274 = vpop.permute.xlu0 %273
    %277 = vset.pattern.permute.xlu0 5
    %278 = vperm.xlu0 %277, %v240
    %v279 = vpop.permute.xlu0 %278
    %282 = vset.pattern.permute.xlu0 5
    %283 = vperm.xlu0 %282, %v241
    %v284 = vpop.permute.xlu0 %283
    %v286 = vadd.f32 %v262, %v269
    %v287 = vadd.f32 %v263, %v274
    %v288 = vadd.f32 %v264, %v279
    %v289 = vadd.f32 %v265, %v284
    %v290 = vtanh.pop %v286
    %v291 = vtanh.pop %v287
    %v292 = vtanh.pop %v288
    %v293 = vtanh.pop %v289
    %v294 = vlaneseq
    %v295 = vshrl.u32 %v294, 7
    %v296 = vadd.s32 %v295, 8
    %v297 = vadd.s32 %v295, 16
    %v298 = vadd.s32 %v295, 24
    %v299 = vlaneseq
    %v300 = vand.u32 %v299, 127
    %v301 = vmul.u32 %v295, 16
    %v302 = vmul.u32 %v296, 16
    %v303 = vmul.u32 %v297, 16
    %v304 = vmul.u32 %v298, 16
    %v305 = vadd.s32 %v301, %v300
    %v306 = vadd.s32 %v302, %v300
    %v307 = vadd.s32 %v303, %v300
    %v308 = vadd.s32 %v304, %v300
    %v309 = vmul.u32 %v305, 2654435769
    %v310 = vmul.u32 %v306, 2654435769
    %v311 = vmul.u32 %v307, 2654435769
    %v312 = vmul.u32 %v308, 2654435769
    %s313 = smul.u32 %s33, 2246822507
    %v314 = vstv %s313
    %v315 = vadd.s32 %v309, %v314
    %v316 = vadd.s32 %v310, %v314
    %v317 = vadd.s32 %v311, %v314
    %v318 = vadd.s32 %v312, %v314
    %v319 = vadd.s32 %v315, 3266489909
    %v320 = vadd.s32 %v316, 3266489909
    %v321 = vadd.s32 %v317, 3266489909
    %v322 = vadd.s32 %v318, 3266489909
    %v323 = vshrl.u32 %v319, 16
    %v324 = vshrl.u32 %v320, 16
    %v325 = vshrl.u32 %v321, 16
    %v326 = vshrl.u32 %v322, 16
    %v327 = vxor.u32 %v319, %v323
    %v328 = vxor.u32 %v320, %v324
    %v329 = vxor.u32 %v321, %v325
    %v330 = vxor.u32 %v322, %v326
    %v331 = vmul.u32 %v327, 2146121005
    %v332 = vmul.u32 %v328, 2146121005
    %v333 = vmul.u32 %v329, 2146121005
    %v334 = vmul.u32 %v330, 2146121005
    %v335 = vshrl.u32 %v331, 15
    %v336 = vshrl.u32 %v332, 15
    %v337 = vshrl.u32 %v333, 15
    %v338 = vshrl.u32 %v334, 15
    %v339 = vxor.u32 %v331, %v335
    %v340 = vxor.u32 %v332, %v336
    %v341 = vxor.u32 %v333, %v337
    %v342 = vxor.u32 %v334, %v338
    %v343 = vmul.u32 %v339, 2221713035
    %v344 = vmul.u32 %v340, 2221713035
    %v345 = vmul.u32 %v341, 2221713035
    %v346 = vmul.u32 %v342, 2221713035
    %v347 = vshrl.u32 %v343, 16
    %v348 = vshrl.u32 %v344, 16
    %v349 = vshrl.u32 %v345, 16
    %v350 = vshrl.u32 %v346, 16
    %v351 = vxor.u32 %v343, %v347
    %v352 = vxor.u32 %v344, %v348
    %v353 = vxor.u32 %v345, %v349
    %v354 = vxor.u32 %v346, %v350
    %vm355 = vcmp.ge.u32.totalorder %v351, 1288490189
    %vm356 = vcmp.ge.u32.totalorder %v352, 1288490189
    %vm357 = vcmp.ge.u32.totalorder %v353, 1288490189
    %vm358 = vcmp.ge.u32.totalorder %v354, 1288490189
    %v359 = vsel %vm355, %v290, 0.0
    %v360 = vsel %vm356, %v291, 0.0
    %v361 = vsel %vm357, %v292, 0.0
    %v362 = vsel %vm358, %v293, 0.0
    %v363 = vld [vmem:[#allocation3] sm:$0xff]
    %v364 = vld [vmem:[#allocation3 + $0x8] sm:$0xff]
    %v365 = vld [vmem:[#allocation3 + $0x10] sm:$0xff]
    %v366 = vld [vmem:[#allocation3 + $0x18] sm:$0xff]
    %367 = vset.pattern.permute.xlu0 6
    %368 = vperm.xlu0 %367, %v35
    %v369 = vpop.permute.xlu0 %368
    %371 = vset.pattern.permute.xlu0 6
    %372 = vperm.xlu0 %371, %v36
    %v373 = vpop.permute.xlu0 %372
    %375 = vset.pattern.permute.xlu0 6
    %376 = vperm.xlu0 %375, %v37
    %v377 = vpop.permute.xlu0 %376
    %379 = vset.pattern.permute.xlu0 6
    %380 = vperm.xlu0 %379, %v38
    %v381 = vpop.permute.xlu0 %380
    %vm383 = vcmask 261120
    %v385 = vsel %vm383, %v363, 0
    %v388 = vsel %vm383, %v364, 0
    %v391 = vsel %vm383, %v365, 0
    %v394 = vsel %vm383, %v366, 0
    %396 = vmatprep.subr.mxu0 0.0
    %397 = vmatpush1.msra.mxu0 %v359
    %398 = vmatprep.subr.mxu0 0.0
    %399 = vmatpush1.msra.mxu0 %v360
    %400 = vmatprep.subr.mxu0 0.0
    %401 = vmatpush1.msra.mxu0 %v361
    %402 = vmatprep.subr.mxu0 0.0
    %403 = vmatpush1.msra.mxu0 %v362
    %404 = vmatprep.subr.mxu0 0.0
    %405 = vmatpush1.msra.mxu0 0.0
    %406 = vmatprep.subr.mxu0 0.0
    %407 = vmatpush1.msra.mxu0 0.0
    %408 = vmatprep.subr.mxu0 0.0
    %409 = vmatpush1.msra.mxu0 0.0
    %410 = vmatprep.subr.mxu0 0.0
    %411 = vmatpush1.msra.mxu0 0.0
    %412 = vmatprep.subr.mxu0 0.0
    %413 = vmatpush1.msra.mxu0 0.0
    %414 = vmatprep.subr.mxu0 0.0
    %415 = vmatpush1.msra.mxu0 0.0
    %416 = vmatprep.subr.mxu0 0.0
    %417 = vmatpush1.msra.mxu0 0.0
    %418 = vmatprep.subr.mxu0 0.0
    %419 = vmatpush1.msra.mxu0 0.0
    %420 = vmatprep.subr.mxu0 0.0
    %421 = vmatpush1.msra.mxu0 0.0
    %422 = vmatprep.subr.mxu0 0.0
    %423 = vmatpush1.msra.mxu0 0.0
    %424 = vmatprep.subr.mxu0 0.0
    %425 = vmatpush1.msra.mxu0 0.0
    %426 = vmatprep.subr.mxu0 0.0
    %427 = vmatpush1.msra.mxu0 0.0
    %428 = vmatprep.subr.mxu0 0.0
    %429 = vmatpush1.msra.mxu0 0.0
    %430 = vmatprep.subr.mxu0 0.0
    %431 = vmatpush1.msra.mxu0 0.0
    %432 = vmatprep.subr.mxu0 0.0
    %433 = vmatpush1.msra.mxu0 0.0
    %434 = vmatprep.subr.mxu0 0.0
    %435 = vmatpush1.msra.mxu0 0.0
    %436 = vmatprep.subr.mxu0 0.0
    %437 = vmatpush1.msra.mxu0 0.0
    %438 = vmatprep.subr.mxu0 0.0
    %439 = vmatpush1.msra.mxu0 0.0
    %440 = vmatprep.subr.mxu0 0.0
    %441 = vmatpush1.msra.mxu0 0.0
    %442 = vmatprep.subr.mxu0 0.0
    %443 = vmatpush1.msra.mxu0 0.0
    %444 = vmatprep.subr.mxu0 0.0
    %445 = vmatpush1.msra.mxu0 0.0
    %446 = vmatprep.subr.mxu0 0.0
    %447 = vmatpush1.msra.mxu0 0.0
    %448 = vmatprep.subr.mxu0 0.0
    %449 = vmatpush1.msra.mxu0 0.0
    %450 = vmatprep.subr.mxu0 0.0
    %451 = vmatpush1.msra.mxu0 0.0
    %452 = vmatprep.subr.mxu0 0.0
    %453 = vmatpush1.msra.mxu0 0.0
    %454 = vmatprep.subr.mxu0 0.0
    %455 = vmatpush1.msra.mxu0 0.0
    %456 = vmatprep.subr.mxu0 0.0
    %457 = vmatpush1.msra.mxu0 0.0
    %458 = vmatprep.subr.mxu0 0.0
    %459 = vmatpush1.msra.mxu0 0.0
    %460 = vmatprep.mubr.f32.mxu0 0.0
    %461 = vmatmul.mubr.f32.gmra.mrb[0].mxu0 %v385
    %v462 = vpop.f32.mrb[0].mxu0
    %v463 = vadd.f32 %v369, %v462
    %v464 = vpop.f32.mrb[0].mxu0
    %465 = vmatprep.mubr.f32.mxu0 0.0
    %466 = vmatmul.mubr.f32.gmra.mrb[0].mxu0 %v388
    %v467 = vpop.f32.mrb[0].mxu0
    %v468 = vadd.f32 %v373, %v467
    %v469 = vpop.f32.mrb[0].mxu0
    %470 = vmatprep.mubr.f32.mxu0 0.0
    %471 = vmatmul.mubr.f32.gmra.mrb[0].mxu0 %v391
    %v472 = vpop.f32.mrb[0].mxu0
    %v473 = vadd.f32 %v377, %v472
    %v474 = vpop.f32.mrb[0].mxu0
    %475 = vmatprep.mubr.f32.mxu0 0.0
    %476 = vmatmul.mubr.f32.gmra.mrb[0].mxu0 %v394
    %v477 = vpop.f32.mrb[0].mxu0
    %v478 = vadd.f32 %v381, %v477
    %v479 = vpop.f32.mrb[0].mxu0
    %480 = vdwg.mxu0
    %v481 = vsel %vm157, %v463, 0.0
    %482 = vadd.xlane.f32.xlu0 %v481
    %v483 = vpop.xlane.xlu0 %482
    %v484 = vsel %vm157, %v468, 0.0
    %485 = vadd.xlane.f32.xlu0 %v484
    %v486 = vpop.xlane.xlu0 %485
    %v487 = vsel %vm157, %v473, 0.0
    %488 = vadd.xlane.f32.xlu0 %v487
    %v489 = vpop.xlane.xlu0 %488
    %v490 = vsel %vm157, %v478, 0.0
    %491 = vadd.xlane.f32.xlu0 %v490
    %v492 = vpop.xlane.xlu0 %491
    %v493 = vmul.f32 %v463, %v463
    %v494 = vmul.f32 %v468, %v468
    %v495 = vmul.f32 %v473, %v473
    %v496 = vmul.f32 %v478, %v478
    %v497 = vsel %vm157, %v493, 0.0
    %498 = vadd.xlane.f32.xlu0 %v497
    %v499 = vpop.xlane.xlu0 %498
    %v500 = vsel %vm157, %v494, 0.0
    %501 = vadd.xlane.f32.xlu0 %v500
    %v502 = vpop.xlane.xlu0 %501
    %v503 = vsel %vm157, %v495, 0.0
    %504 = vadd.xlane.f32.xlu0 %v503
    %v505 = vpop.xlane.xlu0 %504
    %v506 = vsel %vm157, %v496, 0.0
    %507 = vadd.xlane.f32.xlu0 %v506
    %v508 = vpop.xlane.xlu0 %507
    %v509 = vmul.f32 %v483, 0.0625
    %v510 = vmul.f32 %v486, 0.0625
    %v511 = vmul.f32 %v489, 0.0625
    %v512 = vmul.f32 %v492, 0.0625
    %v513 = vmul.f32 %v499, 0.0625
    %v514 = vmul.f32 %v502, 0.0625
    %v515 = vmul.f32 %v505, 0.0625
    %v516 = vmul.f32 %v508, 0.0625
    %v517 = vmul.f32 %v509, %v509
    %v518 = vmul.f32 %v510, %v510
    %v519 = vmul.f32 %v511, %v511
    %v520 = vmul.f32 %v512, %v512
    %v521 = vsub.f32 %v513, %v517
    %v522 = vsub.f32 %v514, %v518
    %v523 = vsub.f32 %v515, %v519
    %v524 = vsub.f32 %v516, %v520
    %v525 = vmax.f32 %v521, 0.0
    %v526 = vmax.f32 %v522, 0.0
    %v527 = vmax.f32 %v523, 0.0
    %v528 = vmax.f32 %v524, 0.0
    %v529 = vadd.f32 %v525, 1e-05
    %v530 = vadd.f32 %v526, 1e-05
    %v531 = vadd.f32 %v527, 1e-05
    %v532 = vadd.f32 %v528, 1e-05
    %v533 = vrsqrt.pop %v529
    %v534 = vrsqrt.pop %v530
    %v535 = vrsqrt.pop %v531
    %v536 = vrsqrt.pop %v532
    %v537 = vmul.f32 %v35, %v533
    %v538 = vmul.f32 %v36, %v534
    %v539 = vmul.f32 %v37, %v535
    %v540 = vmul.f32 %v38, %v536
    %v541 = vmul.f32 %v509, %v537
    %v542 = vmul.f32 %v510, %v538
    %v543 = vmul.f32 %v511, %v539
    %v544 = vmul.f32 %v512, %v540
    %549 = vrot.lane.b32.xlu0 %v541, 2
    %v550 = vpop.permute.xlu0 %549
    %551 = vrot.lane.b32.xlu0 %v542, 2
    %v552 = vpop.permute.xlu0 %551
    %553 = vrot.lane.b32.xlu0 %v543, 2
    %v554 = vpop.permute.xlu0 %553
    %555 = vrot.lane.b32.xlu0 %v544, 2
    %v556 = vpop.permute.xlu0 %555
    %v561 = vsub.f32 %v35, %v550
    %v562 = vsub.f32 %v36, %v552
    %v563 = vsub.f32 %v37, %v554
    %v564 = vsub.f32 %v38, %v556
    %566 = vset.pattern.permute.xlu0 8
    %567 = vperm.xlu0 %566, %v537
    %v568 = vpop.permute.xlu0 %567
    %571 = vset.pattern.permute.xlu0 8
    %572 = vperm.xlu0 %571, %v538
    %v573 = vpop.permute.xlu0 %572
    %576 = vset.pattern.permute.xlu0 8
    %577 = vperm.xlu0 %576, %v539
    %v578 = vpop.permute.xlu0 %577
    %581 = vset.pattern.permute.xlu0 8
    %582 = vperm.xlu0 %581, %v540
    %v583 = vpop.permute.xlu0 %582
    %v585 = vmul.f32 %v463, %v568
    %v586 = vmul.f32 %v468, %v573
    %v587 = vmul.f32 %v473, %v578
    %v588 = vmul.f32 %v478, %v583
    %590 = vset.pattern.permute.xlu0 10
    %591 = vperm.xlu0 %590, %v561
    %v592 = vpop.permute.xlu0 %591
    %595 = vset.pattern.permute.xlu0 10
    %596 = vperm.xlu0 %595, %v562
    %v597 = vpop.permute.xlu0 %596
    %600 = vset.pattern.permute.xlu0 10
    %601 = vperm.xlu0 %600, %v563
    %v602 = vpop.permute.xlu0 %601
    %605 = vset.pattern.permute.xlu0 10
    %606 = vperm.xlu0 %605, %v564
    %v607 = vpop.permute.xlu0 %606
    %v609 = vadd.f32 %v585, %v592
    %v610 = vadd.f32 %v586, %v597
    %v611 = vadd.f32 %v587, %v602
    %v612 = vadd.f32 %v588, %v607
    %v613 = vtanh.pop %v609
    %v614 = vtanh.pop %v610
    %v615 = vtanh.pop %v611
    %v616 = vtanh.pop %v612
    %v617 = vadd.s32 %v315, 2238012522
    %v618 = vadd.s32 %v316, 2238012522
    %v619 = vadd.s32 %v317, 2238012522
    %v620 = vadd.s32 %v318, 2238012522
    %v621 = vshrl.u32 %v617, 16
    %v622 = vshrl.u32 %v618, 16
    %v623 = vshrl.u32 %v619, 16
    %v624 = vshrl.u32 %v620, 16
    %v625 = vxor.u32 %v617, %v621
    %v626 = vxor.u32 %v618, %v622
    %v627 = vxor.u32 %v619, %v623
    %v628 = vxor.u32 %v620, %v624
    %v629 = vmul.u32 %v625, 2146121005
    %v630 = vmul.u32 %v626, 2146121005
    %v631 = vmul.u32 %v627, 2146121005
    %v632 = vmul.u32 %v628, 2146121005
    %v633 = vshrl.u32 %v629, 15
    %v634 = vshrl.u32 %v630, 15
    %v635 = vshrl.u32 %v631, 15
    %v636 = vshrl.u32 %v632, 15
    %v637 = vxor.u32 %v629, %v633
    %v638 = vxor.u32 %v630, %v634
    %v639 = vxor.u32 %v631, %v635
    %v640 = vxor.u32 %v632, %v636
    %v641 = vmul.u32 %v637, 2221713035
    %v642 = vmul.u32 %v638, 2221713035
    %v643 = vmul.u32 %v639, 2221713035
    %v644 = vmul.u32 %v640, 2221713035
    %v645 = vshrl.u32 %v641, 16
    %v646 = vshrl.u32 %v642, 16
    %v647 = vshrl.u32 %v643, 16
    %v648 = vshrl.u32 %v644, 16
    %v649 = vxor.u32 %v641, %v645
    %v650 = vxor.u32 %v642, %v646
    %v651 = vxor.u32 %v643, %v647
    %v652 = vxor.u32 %v644, %v648
    %vm653 = vcmp.ge.u32.totalorder %v649, 1288490189
    %vm654 = vcmp.ge.u32.totalorder %v650, 1288490189
    %vm655 = vcmp.ge.u32.totalorder %v651, 1288490189
    %vm656 = vcmp.ge.u32.totalorder %v652, 1288490189
    %v657 = vsel %vm653, %v613, 0.0
    %v658 = vsel %vm654, %v614, 0.0
    %v659 = vsel %vm655, %v615, 0.0
    %v660 = vsel %vm656, %v616, 0.0
    %s661 = scalar_lea.vmem [#allocation3], 32
    %v662 = vld [vmem:[%s661] sm:$0xff]
    %v663 = vld [vmem:[%s661 + $0x8] sm:$0xff]
    %v664 = vld [vmem:[%s661 + $0x10] sm:$0xff]
    %v665 = vld [vmem:[%s661 + $0x18] sm:$0xff]
    %666 = vset.pattern.permute.xlu0 7
    %667 = vperm.xlu0 %666, %v35
    %v668 = vpop.permute.xlu0 %667
    %670 = vset.pattern.permute.xlu0 7
    %671 = vperm.xlu0 %670, %v36
    %v672 = vpop.permute.xlu0 %671
    %674 = vset.pattern.permute.xlu0 7
    %675 = vperm.xlu0 %674, %v37
    %v676 = vpop.permute.xlu0 %675
    %678 = vset.pattern.permute.xlu0 7
    %679 = vperm.xlu0 %678, %v38
    %v680 = vpop.permute.xlu0 %679
    %v683 = vsel %vm383, %v662, 0
    %v686 = vsel %vm383, %v663, 0
    %v689 = vsel %vm383, %v664, 0
    %v692 = vsel %vm383, %v665, 0
    %694 = vmatprep.subr.mxu0 0.0
    %695 = vmatpush1.msra.mxu0 %v657
    %696 = vmatprep.subr.mxu0 0.0
    %697 = vmatpush1.msra.mxu0 %v658
    %698 = vmatprep.subr.mxu0 0.0
    %699 = vmatpush1.msra.mxu0 %v659
    %700 = vmatprep.subr.mxu0 0.0
    %701 = vmatpush1.msra.mxu0 %v660
    %702 = vmatprep.subr.mxu0 0.0
    %703 = vmatpush1.msra.mxu0 0.0
    %704 = vmatprep.subr.mxu0 0.0
    %705 = vmatpush1.msra.mxu0 0.0
    %706 = vmatprep.subr.mxu0 0.0
    %707 = vmatpush1.msra.mxu0 0.0
    %708 = vmatprep.subr.mxu0 0.0
    %709 = vmatpush1.msra.mxu0 0.0
    %710 = vmatprep.subr.mxu0 0.0
    %711 = vmatpush1.msra.mxu0 0.0
    %712 = vmatprep.subr.mxu0 0.0
    %713 = vmatpush1.msra.mxu0 0.0
    %714 = vmatprep.subr.mxu0 0.0
    %715 = vmatpush1.msra.mxu0 0.0
    %716 = vmatprep.subr.mxu0 0.0
    %717 = vmatpush1.msra.mxu0 0.0
    %718 = vmatprep.subr.mxu0 0.0
    %719 = vmatpush1.msra.mxu0 0.0
    %720 = vmatprep.subr.mxu0 0.0
    %721 = vmatpush1.msra.mxu0 0.0
    %722 = vmatprep.subr.mxu0 0.0
    %723 = vmatpush1.msra.mxu0 0.0
    %724 = vmatprep.subr.mxu0 0.0
    %725 = vmatpush1.msra.mxu0 0.0
    %726 = vmatprep.subr.mxu0 0.0
    %727 = vmatpush1.msra.mxu0 0.0
    %728 = vmatprep.subr.mxu0 0.0
    %729 = vmatpush1.msra.mxu0 0.0
    %730 = vmatprep.subr.mxu0 0.0
    %731 = vmatpush1.msra.mxu0 0.0
    %732 = vmatprep.subr.mxu0 0.0
    %733 = vmatpush1.msra.mxu0 0.0
    %734 = vmatprep.subr.mxu0 0.0
    %735 = vmatpush1.msra.mxu0 0.0
    %736 = vmatprep.subr.mxu0 0.0
    %737 = vmatpush1.msra.mxu0 0.0
    %738 = vmatprep.subr.mxu0 0.0
    %739 = vmatpush1.msra.mxu0 0.0
    %740 = vmatprep.subr.mxu0 0.0
    %741 = vmatpush1.msra.mxu0 0.0
    %742 = vmatprep.subr.mxu0 0.0
    %743 = vmatpush1.msra.mxu0 0.0
    %744 = vmatprep.subr.mxu0 0.0
    %745 = vmatpush1.msra.mxu0 0.0
    %746 = vmatprep.subr.mxu0 0.0
    %747 = vmatpush1.msra.mxu0 0.0
    %748 = vmatprep.subr.mxu0 0.0
    %749 = vmatpush1.msra.mxu0 0.0
    %750 = vmatprep.subr.mxu0 0.0
    %751 = vmatpush1.msra.mxu0 0.0
    %752 = vmatprep.subr.mxu0 0.0
    %753 = vmatpush1.msra.mxu0 0.0
    %754 = vmatprep.subr.mxu0 0.0
    %755 = vmatpush1.msra.mxu0 0.0
    %756 = vmatprep.subr.mxu0 0.0
    %757 = vmatpush1.msra.mxu0 0.0
    %758 = vmatprep.mubr.f32.mxu0 0.0
    %759 = vmatmul.mubr.f32.gmra.mrb[0].mxu0 %v683
    %v760 = vpop.f32.mrb[0].mxu0
    %v761 = vadd.f32 %v668, %v760
    %v762 = vpop.f32.mrb[0].mxu0
    %763 = vmatprep.mubr.f32.mxu0 0.0
    %764 = vmatmul.mubr.f32.gmra.mrb[0].mxu0 %v686
    %v765 = vpop.f32.mrb[0].mxu0
    %v766 = vadd.f32 %v672, %v765
    %v767 = vpop.f32.mrb[0].mxu0
    %768 = vmatprep.mubr.f32.mxu0 0.0
    %769 = vmatmul.mubr.f32.gmra.mrb[0].mxu0 %v689
    %v770 = vpop.f32.mrb[0].mxu0
    %v771 = vadd.f32 %v676, %v770
    %v772 = vpop.f32.mrb[0].mxu0
    %773 = vmatprep.mubr.f32.mxu0 0.0
    %774 = vmatmul.mubr.f32.gmra.mrb[0].mxu0 %v692
    %v775 = vpop.f32.mrb[0].mxu0
    %v776 = vadd.f32 %v680, %v775
    %v777 = vpop.f32.mrb[0].mxu0
    %778 = vdwg.mxu0
    %v779 = vsel %vm157, %v761, 0.0
    %780 = vadd.xlane.f32.xlu0 %v779
    %v781 = vpop.xlane.xlu0 %780
    %v782 = vsel %vm157, %v766, 0.0
    %783 = vadd.xlane.f32.xlu0 %v782
    %v784 = vpop.xlane.xlu0 %783
    %v785 = vsel %vm157, %v771, 0.0
    %786 = vadd.xlane.f32.xlu0 %v785
    %v787 = vpop.xlane.xlu0 %786
    %v788 = vsel %vm157, %v776, 0.0
    %789 = vadd.xlane.f32.xlu0 %v788
    %v790 = vpop.xlane.xlu0 %789
    %v791 = vmul.f32 %v761, %v761
    %v792 = vmul.f32 %v766, %v766
    %v793 = vmul.f32 %v771, %v771
    %v794 = vmul.f32 %v776, %v776
    %v795 = vsel %vm157, %v791, 0.0
    %796 = vadd.xlane.f32.xlu0 %v795
    %v797 = vpop.xlane.xlu0 %796
    %v798 = vsel %vm157, %v792, 0.0
    %799 = vadd.xlane.f32.xlu0 %v798
    %v800 = vpop.xlane.xlu0 %799
    %v801 = vsel %vm157, %v793, 0.0
    %802 = vadd.xlane.f32.xlu0 %v801
    %v803 = vpop.xlane.xlu0 %802
    %v804 = vsel %vm157, %v794, 0.0
    %805 = vadd.xlane.f32.xlu0 %v804
    %v806 = vpop.xlane.xlu0 %805
    %v807 = vmul.f32 %v781, 0.0625
    %v808 = vmul.f32 %v784, 0.0625
    %v809 = vmul.f32 %v787, 0.0625
    %v810 = vmul.f32 %v790, 0.0625
    %v811 = vmul.f32 %v797, 0.0625
    %v812 = vmul.f32 %v800, 0.0625
    %v813 = vmul.f32 %v803, 0.0625
    %v814 = vmul.f32 %v806, 0.0625
    %v815 = vmul.f32 %v807, %v807
    %v816 = vmul.f32 %v808, %v808
    %v817 = vmul.f32 %v809, %v809
    %v818 = vmul.f32 %v810, %v810
    %v819 = vsub.f32 %v811, %v815
    %v820 = vsub.f32 %v812, %v816
    %v821 = vsub.f32 %v813, %v817
    %v822 = vsub.f32 %v814, %v818
    %v823 = vmax.f32 %v819, 0.0
    %v824 = vmax.f32 %v820, 0.0
    %v825 = vmax.f32 %v821, 0.0
    %v826 = vmax.f32 %v822, 0.0
    %v827 = vadd.f32 %v823, 1e-05
    %v828 = vadd.f32 %v824, 1e-05
    %v829 = vadd.f32 %v825, 1e-05
    %v830 = vadd.f32 %v826, 1e-05
    %v831 = vrsqrt.pop %v827
    %v832 = vrsqrt.pop %v828
    %v833 = vrsqrt.pop %v829
    %v834 = vrsqrt.pop %v830
    %v835 = vmul.f32 %v35, %v831
    %v836 = vmul.f32 %v36, %v832
    %v837 = vmul.f32 %v37, %v833
    %v838 = vmul.f32 %v38, %v834
    %v839 = vmul.f32 %v807, %v835
    %v840 = vmul.f32 %v808, %v836
    %v841 = vmul.f32 %v809, %v837
    %v842 = vmul.f32 %v810, %v838
    %847 = vrot.lane.b32.xlu0 %v839, 2
    %v848 = vpop.permute.xlu0 %847
    %849 = vrot.lane.b32.xlu0 %v840, 2
    %v850 = vpop.permute.xlu0 %849
    %851 = vrot.lane.b32.xlu0 %v841, 2
    %v852 = vpop.permute.xlu0 %851
    %853 = vrot.lane.b32.xlu0 %v842, 2
    %v854 = vpop.permute.xlu0 %853
    %v859 = vsub.f32 %v35, %v848
    %v860 = vsub.f32 %v36, %v850
    %v861 = vsub.f32 %v37, %v852
    %v862 = vsub.f32 %v38, %v854
    %864 = vset.pattern.permute.xlu0 9
    %865 = vperm.xlu0 %864, %v835
    %v866 = vpop.permute.xlu0 %865
    %869 = vset.pattern.permute.xlu0 9
    %870 = vperm.xlu0 %869, %v836
    %v871 = vpop.permute.xlu0 %870
    %874 = vset.pattern.permute.xlu0 9
    %875 = vperm.xlu0 %874, %v837
    %v876 = vpop.permute.xlu0 %875
    %879 = vset.pattern.permute.xlu0 9
    %880 = vperm.xlu0 %879, %v838
    %v881 = vpop.permute.xlu0 %880
    %v883 = vmul.f32 %v761, %v866
    %v884 = vmul.f32 %v766, %v871
    %v885 = vmul.f32 %v771, %v876
    %v886 = vmul.f32 %v776, %v881
    %888 = vset.pattern.permute.xlu0 11
    %889 = vperm.xlu0 %888, %v859
    %v890 = vpop.permute.xlu0 %889
    %893 = vset.pattern.permute.xlu0 11
    %894 = vperm.xlu0 %893, %v860
    %v895 = vpop.permute.xlu0 %894
    %898 = vset.pattern.permute.xlu0 11
    %899 = vperm.xlu0 %898, %v861
    %v900 = vpop.permute.xlu0 %899
    %903 = vset.pattern.permute.xlu0 11
    %904 = vperm.xlu0 %903, %v862
    %v905 = vpop.permute.xlu0 %904
    %v907 = vadd.f32 %v883, %v890
    %v908 = vadd.f32 %v884, %v895
    %v909 = vadd.f32 %v885, %v900
    %v910 = vadd.f32 %v886, %v905
    %v911 = vtanh.pop %v907
    %v912 = vtanh.pop %v908
    %v913 = vtanh.pop %v909
    %v914 = vtanh.pop %v910
    %v915 = vadd.s32 %v315, 1209535135
    %v916 = vadd.s32 %v316, 1209535135
    %v917 = vadd.s32 %v317, 1209535135
    %v918 = vadd.s32 %v318, 1209535135
    %v919 = vshrl.u32 %v915, 16
    %v920 = vshrl.u32 %v916, 16
    %v921 = vshrl.u32 %v917, 16
    %v922 = vshrl.u32 %v918, 16
    %v923 = vxor.u32 %v915, %v919
    %v924 = vxor.u32 %v916, %v920
    %v925 = vxor.u32 %v917, %v921
    %v926 = vxor.u32 %v918, %v922
    %v927 = vmul.u32 %v923, 2146121005
    %v928 = vmul.u32 %v924, 2146121005
    %v929 = vmul.u32 %v925, 2146121005
    %v930 = vmul.u32 %v926, 2146121005
    %v931 = vshrl.u32 %v927, 15
    %v932 = vshrl.u32 %v928, 15
    %v933 = vshrl.u32 %v929, 15
    %v934 = vshrl.u32 %v930, 15
    %v935 = vxor.u32 %v927, %v931
    %v936 = vxor.u32 %v928, %v932
    %v937 = vxor.u32 %v929, %v933
    %v938 = vxor.u32 %v930, %v934
    %v939 = vmul.u32 %v935, 2221713035
    %v940 = vmul.u32 %v936, 2221713035
    %v941 = vmul.u32 %v937, 2221713035
    %v942 = vmul.u32 %v938, 2221713035
    %v943 = vshrl.u32 %v939, 16
    %v944 = vshrl.u32 %v940, 16
    %v945 = vshrl.u32 %v941, 16
    %v946 = vshrl.u32 %v942, 16
    %v947 = vxor.u32 %v939, %v943
    %v948 = vxor.u32 %v940, %v944
    %v949 = vxor.u32 %v941, %v945
    %v950 = vxor.u32 %v942, %v946
    %vm951 = vcmp.ge.u32.totalorder %v947, 1288490189
    %vm952 = vcmp.ge.u32.totalorder %v948, 1288490189
    %vm953 = vcmp.ge.u32.totalorder %v949, 1288490189
    %vm954 = vcmp.ge.u32.totalorder %v950, 1288490189
    %v955 = vsel %vm951, %v911, 0.0
    %v956 = vsel %vm952, %v912, 0.0
    %v957 = vsel %vm953, %v913, 0.0
    %v958 = vsel %vm954, %v914, 0.0
    %959 = vset.pattern.permute.xlu0 12
    %960 = vperm.xlu0 %959, %v35
    %v961 = vpop.permute.xlu0 %960
    %963 = vset.pattern.permute.xlu0 12
    %964 = vperm.xlu0 %963, %v36
    %v965 = vpop.permute.xlu0 %964
    %967 = vset.pattern.permute.xlu0 12
    %968 = vperm.xlu0 %967, %v37
    %v969 = vpop.permute.xlu0 %968
    %971 = vset.pattern.permute.xlu0 12
    %972 = vperm.xlu0 %971, %v38
    %v973 = vpop.permute.xlu0 %972
    %v975 = vmul.f32 %v955, %v961
    %v976 = vmul.f32 %v956, %v965
    %v977 = vmul.f32 %v957, %v969
    %v978 = vmul.f32 %v958, %v973
    %v979 = vsel %vm157, %v975, 0.0
    %v980 = vsel %vm157, %v976, 0.0
    %v981 = vadd.f32 %v979, %v980
    %v982 = vsel %vm157, %v977, 0.0
    %v983 = vadd.f32 %v981, %v982
    %v984 = vsel %vm157, %v978, 0.0
    %v985 = vadd.f32 %v983, %v984
    %v986 = vrot.slane %v985, 4
    %v987 = vadd.f32 %v985, %v986
    %v988 = vrot.slane %v987, 2
    %v989 = vadd.f32 %v987, %v988
    %v990 = vrot.slane %v989, 1
    %v991 = vadd.f32 %v989, %v990
    %v992 = vld [vmem:[%s3] sm:$0x1]
    %994 = vset.pattern.permute.xlu0 13
    %995 = vperm.xlu0 %994, %v992
    %v996 = vpop.permute.xlu0 %995
    %v998 = vadd.f32 %v991, %v996
    %vm999 = vcmask 122880
    %1000 = vst.msk [vmem:[#allocation6] sm:$0x1] %vm999, %v998
    // Predicated region
    $region22: #{mlp_forward.1} parent=1 // pred_check
      _
    $region23: #{mlp_forward.1} parent=1 // pred_check_branch
      %1002 = sbr.rel (0) target = $region25
    $region24: #{mlp_forward.1} parent=1 // pred_region
      %s1004 = ssub.s32 16, 16
      %1005 = vsyncadd [#allocation5], %s1004
      %s1007 = sshll.u32 [#allocation6], 4
      %s1008 = int_to_ptr.vmem [resolvable:$true] %s1007
      %1010 = dma.vmem_to_hbm [thread:$0]  %s1008, 16, %s4, [#allocation5]
    $region25: #{mlp_forward.1} parent=1 // pred_fallthru
      _
    // Predicated region
    $region26: #{mlp_forward.1} parent=1 // pred_check
      _
    $region27: #{mlp_forward.1} parent=1 // pred_check_branch
      %1012 = sbr.rel (0) target = $region29
    $region28: #{mlp_forward.1} parent=1 // pred_region
      %1013 = dma.done [#allocation5], 16
    $region29: #{mlp_forward.1} parent=1 // pred_fallthru
      _
    %1014 = vsyncpa [#allocation4], 1
    %1015 = vsyncpa [#allocation5], 1

</llo_original>
